<compile_context>
chip_gen: v7x
topology: tpu7x:2x2x1
jax: 0.10.0
libtpu: 0.0.40
codegen_flags: <defaults>
</compile_context>

<pallas_src>
import functools
import math

import jax
import jax.numpy as jnp
from jax.experimental import pallas as pl
from jax.experimental.pallas import tpu as pltpu

GHOST_SAMPLES = 40
EPS = 1e-5


def _vmem_budget_bytes():
    """Scoped VMEM limit per TPU generation (headroom below physical capacity)."""
    try:
        cap = int(pltpu.get_tpu_info().vmem_capacity_bytes)
    except Exception:
        cap = 64 * 1024 * 1024  # conservative (v7x-sized) fallback
    return max(32 * 1024 * 1024, min((cap * 3) // 4, 96 * 1024 * 1024))


def _largest_divisor(n, multiple_of, at_most):
    """Largest divisor of n that is a multiple of `multiple_of` and <= at_most."""
    d = (min(at_most, n) // multiple_of) * multiple_of
    while d >= multiple_of:
        if n % d == 0:
            return d
        d -= multiple_of
    return None


# ----------------------------------------------------------------------------
# Pass 1: per-channel (shifted) sum / sumsq over the ghost slice
#         -> fused scale / shift.
# ----------------------------------------------------------------------------
def _stats_kernel(x_ref, w_ref, b_ref, scale_ref, shift_ref,
                  m0_sc, sum_sc, sq_sc, *, inv_count):
    ni = pl.program_id(1)
    li = pl.program_id(2)

    x = x_ref[...].astype(jnp.float32)                     # (bn, C_blk, tl)
    bn, _, tl = x.shape

    @pl.when((ni == 0) & (li == 0))
    def _():
        # Per-channel mean of the first block: cheap shift estimate that makes
        # the (E[(x-m0)^2] - E[x-m0]^2) variance numerically robust.
        m0 = jnp.sum(jnp.sum(x, axis=0), axis=-1, keepdims=True) * (
            1.0 / float(bn * tl))
        m0_sc[...] = m0
        sum_sc[...] = jnp.zeros_like(sum_sc)
        sq_sc[...] = jnp.zeros_like(sq_sc)

    xc = x - m0_sc[...][None]                               # (bn, C_blk, tl)
    xs = jnp.sum(xc, axis=0)                                # (C_blk, tl)
    sum_sc[...] += jnp.sum(xs, axis=-1, keepdims=True)      # (C_blk, 1)
    sq_sc[...] += jnp.sum(jnp.sum(xc * xc, axis=0), axis=-1, keepdims=True)

    @pl.when((ni == pl.num_programs(1) - 1) & (li == pl.num_programs(2) - 1))
    def _():
        dm = sum_sc[...] * inv_count                        # E[x - m0]
        mean = m0_sc[...] + dm
        var = jnp.maximum(sq_sc[...] * inv_count - dm * dm, 0.0)
        scale = w_ref[...] * jax.lax.rsqrt(var + EPS)       # w / sqrt(var+eps)
        scale_ref[...] = scale
        shift_ref[...] = b_ref[...] - mean * scale


# ----------------------------------------------------------------------------
# Pass 2: streaming y = x * scale + shift (lane-aligned FMA, no broadcasts).
# ----------------------------------------------------------------------------
def _normalize_kernel(x_ref, scale_ref, shift_ref, o_ref):
    x = x_ref[...].astype(jnp.float32)                      # (bn2, tl)
    o_ref[...] = (x * scale_ref[...] + shift_ref[...]).astype(o_ref.dtype)


def weird_batch_norm_2d(x, weight, bias, ghost_samples=GHOST_SAMPLES):
    """x: (N, C, H, W). Returns same shape/dtype (training-mode forward)."""
    N, C, H, W = x.shape
    L = H * W
    F = C * L
    itemsize = jnp.dtype(x.dtype).itemsize

    # PyTorch x[-g:]: g == 0 selects the whole batch; g > N clamps to N.
    Ng = N if ghost_samples == 0 else min(int(ghost_samples), N)
    n0 = N - Ng

    budget = _vmem_budget_bytes()
    target = min(8 << 20, budget // 16)   # per-block bytes for the main stream

    w2 = weight.reshape(C, 1).astype(jnp.float32)
    b2 = bias.reshape(C, 1).astype(jnp.float32)

    # --------------------------- pass 1: stats ------------------------------
    x3 = x.reshape(N, C, L)

    # Lane tile: multiple of 128 dividing L, or full L when not 128-aligned.
    if L % 128 == 0:
        want = max(128, (target // max(1, C * itemsize)) // 128 * 128)
        tl1 = _largest_divisor(L, 128, min(L, want)) or L
    else:
        tl1 = L

    # Channel block: multiple of 8 (or full C); split for megacore / VMEM cap.
    if C % 8 == 0 and C >= 16:
        c_blk = _largest_divisor(C, 8, C // 2) or C
        if c_blk * tl1 * itemsize > target:
            max_c = max(8, target // max(1, tl1 * itemsize))
            c_blk = _largest_divisor(C, 8, min(c_blk, max_c)) or c_blk
    else:
        c_blk = C

    # Ghost-sample block: must divide Ng and keep the ghost start block-aligned.
    base = Ng if n0 == 0 else math.gcd(Ng, n0)
    bn1 = 1
    for d in range(1, base + 1):
        if base % d == 0 and d * c_blk * tl1 * itemsize <= target:
            bn1 = d
    n0_blk = n0 // bn1

    inv_count = 1.0 / float(Ng * L)
    scale, shift = pl.pallas_call(
        functools.partial(_stats_kernel, inv_count=inv_count),
        out_shape=(jax.ShapeDtypeStruct((C, 1), jnp.float32),
                   jax.ShapeDtypeStruct((C, 1), jnp.float32)),
        grid=(C // c_blk, Ng // bn1, L // tl1),
        in_specs=[
            pl.BlockSpec((bn1, c_blk, tl1), lambda c, n, l: (n + n0_blk, c, l)),
            pl.BlockSpec((c_blk, 1), lambda c, n, l: (c, 0)),
            pl.BlockSpec((c_blk, 1), lambda c, n, l: (c, 0)),
        ],
        out_specs=(pl.BlockSpec((c_blk, 1), lambda c, n, l: (c, 0)),
                   pl.BlockSpec((c_blk, 1), lambda c, n, l: (c, 0))),
        scratch_shapes=[pltpu.VMEM((c_blk, 1), jnp.float32)] * 3,
        compiler_params=pltpu.CompilerParams(
            dimension_semantics=("parallel", "arbitrary", "arbitrary"),
            vmem_limit_bytes=budget),
    )(x3, w2, b2)

    # ------------------------ pass 2: normalize -----------------------------
    # Flat per-sample layout: lane axis tiled in dense 128-multiples regardless
    # of H*W.  scale/shift are pre-broadcast once into tiny (1, F) f32 slabs.
    x_flat = x.reshape(N, F)
    scale_slab = jnp.broadcast_to(scale, (C, L)).reshape(1, F)
    shift_slab = jnp.broadcast_to(shift, (C, L)).reshape(1, F)

    row_bytes = F * itemsize
    if row_bytes >= target or N == 1:
        bn2 = 1
        want = max(128, (target // itemsize) // 128 * 128)
        if want >= F:
            tl2 = F
        else:
            tl2 = None
            t = want
            while t >= max(128, want // 2):   # prefer a divisor (no edge tile)
                if F % t == 0:
                    tl2 = t
                    break
                t -= 128
            if tl2 is None:
                tl2 = want                    # one masked edge tile per row
    else:
        # Small rows: group samples per block (multiple of 8, or the full batch).
        want_rows = max(1, target // row_bytes)
        bn2 = 1
        for d in range(1, N + 1):
            if N % d == 0 and d <= want_rows and (d == 1 or d == N or d % 8 == 0):
                bn2 = d
        tl2 = F

    out_flat = pl.pallas_call(
        _normalize_kernel,
        out_shape=jax.ShapeDtypeStruct((N, F), x.dtype),
        grid=(pl.cdiv(F, tl2), N // bn2),     # lane-tile outer -> slab reuse
        in_specs=[
            pl.BlockSpec((bn2, tl2), lambda l, n: (n, l)),
            pl.BlockSpec((1, tl2), lambda l, n: (0, l)),
            pl.BlockSpec((1, tl2), lambda l, n: (0, l)),
        ],
        out_specs=pl.BlockSpec((bn2, tl2), lambda l, n: (n, l)),
        compiler_params=pltpu.CompilerParams(
            dimension_semantics=("parallel", "parallel"),
            vmem_limit_bytes=budget),
    )(x_flat, scale_slab, shift_slab)

    return out_flat.reshape(N, C, H, W)


def reference(x, weight, bias, ghost_samples=GHOST_SAMPLES):
    xg = x if ghost_samples == 0 else x[-ghost_samples:]
    mean = jnp.mean(xg, axis=(0, 2, 3), keepdims=True)
    var = jnp.mean((xg - mean) ** 2, axis=(0, 2, 3), keepdims=True)
    out = (x - mean) / jnp.sqrt(var + EPS)
    return out * weight.reshape(1, -1, 1, 1) + bias.reshape(1, -1, 1, 1)


if __name__ == "__main__":
    key = jax.random.PRNGKey(0)
    keys = jax.random.split(key, 9)

    # Test 1: module defaults (ghost window covers the whole batch), L % 128 == 0.
    N, C, H, W = 2, 4, 16, 16
    x = jax.random.normal(keys[0], (N, C, H, W), dtype=jnp.float32)
    weight = 1.0 + 0.1 * jax.random.normal(keys[1], (C,), dtype=jnp.float32)
    bias = 0.1 * jax.random.normal(keys[2], (C,), dtype=jnp.float32)
    out = jax.block_until_ready(weird_batch_norm_2d(x, weight, bias))
    ref = reference(x, weight, bias)
    assert out.shape == x.shape and out.dtype == x.dtype
    assert jnp.allclose(out, ref, atol=1e-5, rtol=1e-5), "mismatch vs reference"

    # Test 2: ghost window smaller than the batch (partial-batch stats), small L.
    N2, C2, H2, W2, g2 = 6, 8, 8, 8, 3
    x2 = jax.random.normal(keys[3], (N2, C2, H2, W2), dtype=jnp.float32)
    w2 = 1.0 + 0.1 * jax.random.normal(keys[4], (C2,), dtype=jnp.float32)
    b2 = 0.1 * jax.random.normal(keys[5], (C2,), dtype=jnp.float32)
    out2 = jax.block_until_ready(weird_batch_norm_2d(x2, w2, b2, ghost_samples=g2))
    ref2 = reference(x2, w2, b2, ghost_samples=g2)
    assert jnp.allclose(out2, ref2, atol=1e-5, rtol=1e-5), "ghost-slice mismatch"

    # Test 3: channel-parallel stats path (C >= 16), non-128 H*W, ghost offset.
    N3, C3, H3, W3, g3 = 5, 16, 7, 7, 2
    x3_ = 2.0 + jax.random.normal(keys[6], (N3, C3, H3, W3), dtype=jnp.float32)
    w3 = 1.0 + 0.1 * jax.random.normal(keys[7], (C3,), dtype=jnp.float32)
    b3 = 0.1 * jax.random.normal(keys[8], (C3,), dtype=jnp.float32)
    out3 = jax.block_until_ready(weird_batch_norm_2d(x3_, w3, b3, ghost_samples=g3))
    ref3 = reference(x3_, w3, b3, ghost_samples=g3)
    assert jnp.allclose(out3, ref3, atol=1e-5, rtol=1e-5), "channel-split mismatch"

    print("KERNEL_OK")
</pallas_src>

<mosaic_0001>
module attributes {stable_mosaic.version = 11 : i64} {
  func.func @_stats_kernel(%arg0: i32, %arg1: i32, %arg2: i32, %arg3: memref<2x4x256xf32, #tpu.memory_space<vmem>>, %arg4: memref<4x1xf32, #tpu.memory_space<vmem>>, %arg5: memref<4x1xf32, #tpu.memory_space<vmem>>, %arg6: memref<4x1xf32, #tpu.memory_space<vmem>>, %arg7: memref<4x1xf32, #tpu.memory_space<vmem>>, %arg8: memref<4x1xf32, #tpu.memory_space<vmem>>, %arg9: memref<4x1xf32, #tpu.memory_space<vmem>>, %arg10: memref<4x1xf32, #tpu.memory_space<vmem>>) attributes {dimension_semantics = [#tpu.dimension_semantics<parallel>, #tpu.dimension_semantics<arbitrary>, #tpu.dimension_semantics<arbitrary>], iteration_bounds = array<i64: 1, 1, 1>, scalar_prefetch = 0 : i64, scratch_operands = 3 : i64, tpu.core_type = #tpu.core_type<tc>, window_params = [{transform_indices = @transform_0, window_bounds = array<i64: 2, 4, 256>}, {transform_indices = @transform_1, window_bounds = array<i64: 4, 1>}, {transform_indices = @transform_2, window_bounds = array<i64: 4, 1>}, {transform_indices = @transform_3, window_bounds = array<i64: 4, 1>}, {transform_indices = @transform_4, window_bounds = array<i64: 4, 1>}]} {
    %c0 = arith.constant 0 : index
    %c0_0 = arith.constant 0 : index
    %c0_1 = arith.constant 0 : index
    %0 = vector.load %arg3[%c0, %c0_0, %c0_1] : memref<2x4x256xf32, #tpu.memory_space<vmem>>, vector<2x4x256xf32>
    %c0_i32 = arith.constant 0 : i32
    %1 = arith.cmpi eq, %arg1, %c0_i32 : i32
    %c0_i32_2 = arith.constant 0 : i32
    %2 = arith.cmpi eq, %arg2, %c0_i32_2 : i32
    %3 = arith.andi %1, %2 : i1
    %4 = arith.extui %3 : i1 to i32
    %c0_i32_3 = arith.constant 0 : i32
    %5 = arith.cmpi ne, %4, %c0_i32_3 : i32
    scf.if %5 {
      %cst_20 = arith.constant dense<0.000000e+00> : vector<4x256xf32>
      %28 = vector.multi_reduction <add>, %0, %cst_20 [0] : vector<2x4x256xf32> to vector<4x256xf32>
      %cst_21 = arith.constant dense<0.000000e+00> : vector<4xf32>
      %29 = vector.multi_reduction <add>, %28, %cst_21 [1] : vector<4x256xf32> to vector<4xf32>
      %30 = vector.shape_cast %29 : vector<4xf32> to vector<4x1xf32>
      %cst_22 = arith.constant 0.001953125 : f32
      %31 = vector.broadcast %cst_22 : f32 to vector<4x1xf32>
      %32 = arith.mulf %30, %31 : vector<4x1xf32>
      %c0_23 = arith.constant 0 : index
      %c0_24 = arith.constant 0 : index
      %33 = vector.load %arg8[%c0_23, %c0_24] : memref<4x1xf32, #tpu.memory_space<vmem>>, vector<4x1xf32>
      tpu.vector_store %arg8[%c0_23, %c0_24], %32 {strides = array<i32>} : memref<4x1xf32, #tpu.memory_space<vmem>>, vector<4x1xf32>,
      %cst_25 = arith.constant 0.000000e+00 : f32
      %34 = vector.broadcast %cst_25 : f32 to vector<4x1xf32>
      %c0_26 = arith.constant 0 : index
      %c0_27 = arith.constant 0 : index
      %35 = vector.load %arg9[%c0_26, %c0_27] : memref<4x1xf32, #tpu.memory_space<vmem>>, vector<4x1xf32>
      tpu.vector_store %arg9[%c0_26, %c0_27], %34 {strides = array<i32>} : memref<4x1xf32, #tpu.memory_space<vmem>>, vector<4x1xf32>,
      %cst_28 = arith.constant 0.000000e+00 : f32
      %36 = vector.broadcast %cst_28 : f32 to vector<4x1xf32>
      %c0_29 = arith.constant 0 : index
      %c0_30 = arith.constant 0 : index
      %37 = vector.load %arg10[%c0_29, %c0_30] : memref<4x1xf32, #tpu.memory_space<vmem>>, vector<4x1xf32>
      tpu.vector_store %arg10[%c0_29, %c0_30], %36 {strides = array<i32>} : memref<4x1xf32, #tpu.memory_space<vmem>>, vector<4x1xf32>,
    } else {
    }
    %c0_4 = arith.constant 0 : index
    %c0_5 = arith.constant 0 : index
    %6 = vector.load %arg8[%c0_4, %c0_5] : memref<4x1xf32, #tpu.memory_space<vmem>>, vector<4x1xf32>
    %7 = vector.shape_cast %6 : vector<4x1xf32> to vector<1x4x1xf32>
    %8 = vector.broadcast %7 : vector<1x4x1xf32> to vector<2x4x256xf32>
    %9 = arith.subf %0, %8 : vector<2x4x256xf32>
    %cst = arith.constant dense<0.000000e+00> : vector<4x256xf32>
    %10 = vector.multi_reduction <add>, %9, %cst [0] : vector<2x4x256xf32> to vector<4x256xf32>
    %c0_6 = arith.constant 0 : index
    %c0_7 = arith.constant 0 : index
    %11 = vector.load %arg9[%c0_6, %c0_7] : memref<4x1xf32, #tpu.memory_space<vmem>>, vector<4x1xf32>
    %cst_8 = arith.constant dense<0.000000e+00> : vector<4xf32>
    %12 = vector.multi_reduction <add>, %10, %cst_8 [1] : vector<4x256xf32> to vector<4xf32>
    %13 = vector.shape_cast %12 : vector<4xf32> to vector<4x1xf32>
    %14 = arith.addf %11, %13 : vector<4x1xf32>
    %c0_9 = arith.constant 0 : index
    %c0_10 = arith.constant 0 : index
    %15 = vector.load %arg9[%c0_9, %c0_10] : memref<4x1xf32, #tpu.memory_space<vmem>>, vector<4x1xf32>
    tpu.vector_store %arg9[%c0_9, %c0_10], %14 {strides = array<i32>} : memref<4x1xf32, #tpu.memory_space<vmem>>, vector<4x1xf32>,
    %c0_11 = arith.constant 0 : index
    %c0_12 = arith.constant 0 : index
    %16 = vector.load %arg10[%c0_11, %c0_12] : memref<4x1xf32, #tpu.memory_space<vmem>>, vector<4x1xf32>
    %17 = arith.mulf %9, %9 : vector<2x4x256xf32>
    %cst_13 = arith.constant dense<0.000000e+00> : vector<4x256xf32>
    %18 = vector.multi_reduction <add>, %17, %cst_13 [0] : vector<2x4x256xf32> to vector<4x256xf32>
    %cst_14 = arith.constant dense<0.000000e+00> : vector<4xf32>
    %19 = vector.multi_reduction <add>, %18, %cst_14 [1] : vector<4x256xf32> to vector<4xf32>
    %20 = vector.shape_cast %19 : vector<4xf32> to vector<4x1xf32>
    %21 = arith.addf %16, %20 : vector<4x1xf32>
    %c0_15 = arith.constant 0 : index
    %c0_16 = arith.constant 0 : index
    %22 = vector.load %arg10[%c0_15, %c0_16] : memref<4x1xf32, #tpu.memory_space<vmem>>, vector<4x1xf32>
    tpu.vector_store %arg10[%c0_15, %c0_16], %21 {strides = array<i32>} : memref<4x1xf32, #tpu.memory_space<vmem>>, vector<4x1xf32>,
    %c0_i32_17 = arith.constant 0 : i32
    %23 = arith.cmpi eq, %arg1, %c0_i32_17 : i32
    %c0_i32_18 = arith.constant 0 : i32
    %24 = arith.cmpi eq, %arg2, %c0_i32_18 : i32
    %25 = arith.andi %23, %24 : i1
    %26 = arith.extui %25 : i1 to i32
    %c0_i32_19 = arith.constant 0 : i32
    %27 = arith.cmpi ne, %26, %c0_i32_19 : i32
    scf.if %27 {
      %c0_20 = arith.constant 0 : index
      %c0_21 = arith.constant 0 : index
      %28 = vector.load %arg9[%c0_20, %c0_21] : memref<4x1xf32, #tpu.memory_space<vmem>>, vector<4x1xf32>
      %cst_22 = arith.constant 0.001953125 : f32
      %29 = vector.broadcast %cst_22 : f32 to vector<4x1xf32>
      %30 = arith.mulf %28, %29 : vector<4x1xf32>
      %c0_23 = arith.constant 0 : index
      %c0_24 = arith.constant 0 : index
      %31 = vector.load %arg8[%c0_23, %c0_24] : memref<4x1xf32, #tpu.memory_space<vmem>>, vector<4x1xf32>
      %32 = arith.addf %31, %30 : vector<4x1xf32>
      %c0_25 = arith.constant 0 : index
      %c0_26 = arith.constant 0 : index
      %33 = vector.load %arg10[%c0_25, %c0_26] : memref<4x1xf32, #tpu.memory_space<vmem>>, vector<4x1xf32>
      %cst_27 = arith.constant 0.001953125 : f32
      %34 = vector.broadcast %cst_27 : f32 to vector<4x1xf32>
      %35 = arith.mulf %33, %34 : vector<4x1xf32>
      %36 = arith.mulf %30, %30 : vector<4x1xf32>
      %37 = arith.subf %35, %36 : vector<4x1xf32>
      %cst_28 = arith.constant 0.000000e+00 : f32
      %38 = vector.broadcast %cst_28 : f32 to vector<4x1xf32>
      %39 = arith.maximumf %37, %38 : vector<4x1xf32>
      %c0_29 = arith.constant 0 : index
      %c0_30 = arith.constant 0 : index
      %40 = vector.load %arg4[%c0_29, %c0_30] : memref<4x1xf32, #tpu.memory_space<vmem>>, vector<4x1xf32>
      %cst_31 = arith.constant 9.99999974E-6 : f32
      %41 = vector.broadcast %cst_31 : f32 to vector<4x1xf32>
      %42 = arith.addf %39, %41 : vector<4x1xf32>
      %43 = math.rsqrt %42 : vector<4x1xf32>
      %44 = arith.mulf %40, %43 : vector<4x1xf32>
      %c0_32 = arith.constant 0 : index
      %c0_33 = arith.constant 0 : index
      %45 = vector.load %arg6[%c0_32, %c0_33] : memref<4x1xf32, #tpu.memory_space<vmem>>, vector<4x1xf32>
      tpu.vector_store %arg6[%c0_32, %c0_33], %44 {strides = array<i32>} : memref<4x1xf32, #tpu.memory_space<vmem>>, vector<4x1xf32>,
      %c0_34 = arith.constant 0 : index
      %c0_35 = arith.constant 0 : index
      %46 = vector.load %arg5[%c0_34, %c0_35] : memref<4x1xf32, #tpu.memory_space<vmem>>, vector<4x1xf32>
      %47 = arith.mulf %32, %44 : vector<4x1xf32>
      %48 = arith.subf %46, %47 : vector<4x1xf32>
      %c0_36 = arith.constant 0 : index
      %c0_37 = arith.constant 0 : index
      %49 = vector.load %arg7[%c0_36, %c0_37] : memref<4x1xf32, #tpu.memory_space<vmem>>, vector<4x1xf32>
      tpu.vector_store %arg7[%c0_36, %c0_37], %48 {strides = array<i32>} : memref<4x1xf32, #tpu.memory_space<vmem>>, vector<4x1xf32>,
    } else {
    }
    return
  }
  func.func @transform_0(%arg0: i32, %arg1: i32, %arg2: i32) -> (i32, i32, i32) {
    %c0_i32 = arith.constant 0 : i32
    %0 = arith.addi %arg1, %c0_i32 : i32
    %c0_i32_0 = arith.constant 0 : i32
    return %0, %arg0, %arg2 : i32, i32, i32
  }
  func.func @transform_1(%arg0: i32, %arg1: i32, %arg2: i32) -> (i32, i32) {
    %c0_i32 = arith.constant 0 : i32
    %c0_i32_0 = arith.constant 0 : i32
    return %arg0, %c0_i32 : i32, i32
  }
  func.func @transform_2(%arg0: i32, %arg1: i32, %arg2: i32) -> (i32, i32) {
    %c0_i32 = arith.constant 0 : i32
    %c0_i32_0 = arith.constant 0 : i32
    return %arg0, %c0_i32 : i32, i32
  }
  func.func @transform_3(%arg0: i32, %arg1: i32, %arg2: i32) -> (i32, i32) {
    %c0_i32 = arith.constant 0 : i32
    %c0_i32_0 = arith.constant 0 : i32
    return %arg0, %c0_i32 : i32, i32
  }
  func.func @transform_4(%arg0: i32, %arg1: i32, %arg2: i32) -> (i32, i32) {
    %c0_i32 = arith.constant 0 : i32
    %c0_i32_0 = arith.constant 0 : i32
    return %arg0, %c0_i32 : i32, i32
  }
}

</mosaic_0001>

<llo_original>
// kernel: tpu_custom_call.1
$region0: #{tpu_custom_call.1}
  #allocation0 [shape = 'u32[]', space=smem, size = 0x4, offset = 0x4, fixed_abs, tag = 'smem constant byte address 0x4 - core index']
  #allocation1 [shape = 'u32[144,128]{1,0:T(1,128)}', space=vmem, size = 0x12000, scoped, tag = 'internal scratch']
  #allocation2 [shape = 'f32[4,1]{1,0:T(4,128)}', space=vmem, size = 0x800, scoped, tag = 'scratch operand']
  #allocation3 [shape = 'f32[4,1]{1,0:T(4,128)}', space=vmem, size = 0x800, scoped, tag = 'scratch operand']
  #allocation4 [shape = 'f32[4,1]{1,0:T(4,128)}', space=vmem, size = 0x800, scoped, tag = 'scratch operand']
  %s0 = inlined_call_operand.hbm [shape: f32[2,4,256], index: 0, kind: input, shape index: {}]
  %s1 = inlined_call_operand.vmem [shape: f32[4,1], index: 1, kind: input, shape index: {}]
  %s2 = inlined_call_operand.vmem [shape: f32[4,1], index: 2, kind: input, shape index: {}]
  %s3 = inlined_call_operand.vmem [shape: f32[4,1], index: 3, kind: output, shape index: {0}]
  %s4 = inlined_call_operand.vmem [shape: f32[4,1], index: 4, kind: output, shape index: {1}]
  %5 = xla_tuple %s3, %s4
  %s6 = sld [smem:[#allocation0]]
  $region42: #{tpu_custom_call.1} parent=0
    _
  %s8 = ssub.s32 1, %s6
  %s9 = scalar_select 0, %s8, %s6
  $region1: #{tpu_custom_call.1} parent=0
    #allocation5 [shape = 'u8[8192]{0}', space=vmem, size = 0x2000, scoped, tag = 'input window, operand 0, single buffered']
    #allocation6 [shape = 's32[1]{0}', space=sflag, size = 0x4, scoped, tag = 'scoped memory for tpu_custom_call.1']
    %10 = vsyncpa [#allocation6], 0
    // Predicated region
    $region2: #{tpu_custom_call.1} parent=1 // pred_check
      _
    $region3: #{tpu_custom_call.1} parent=1 // pred_check_branch
      %12 = sbr.rel (0) target = $region5
    $region4: #{tpu_custom_call.1} parent=1 // pred_region
      %s14 = ssub.s32 256, 256
      %15 = vsyncadd [#allocation6], %s14
      %s16 = sshll.u32 [#allocation5], 4
      %s17 = int_to_ptr.vmem [resolvable:$true] %s16
      %22 = dma.hbm_to_vmem [thread:$0]  %s0, 256, %s17, [#allocation6], 128, 128, 8
    $region5: #{tpu_custom_call.1} parent=1 // pred_fallthru
      _
    // Predicated region
    $region6: #{tpu_custom_call.1} parent=1 // pred_check
      _
    $region7: #{tpu_custom_call.1} parent=1 // pred_check_branch
      %24 = sbr.rel (0) target = $region9
    $region8: #{tpu_custom_call.1} parent=1 // pred_region
      _
    $region9: #{tpu_custom_call.1} parent=1 // pred_fallthru
      _
    // Predicated region
    $region10: #{tpu_custom_call.1} parent=1 // pred_check
      _
    $region11: #{tpu_custom_call.1} parent=1 // pred_check_branch
      %26 = sbr.rel (0) target = $region13
    $region12: #{tpu_custom_call.1} parent=1 // pred_region
      _
    $region13: #{tpu_custom_call.1} parent=1 // pred_fallthru
      _
    // Predicated region
    $region14: #{tpu_custom_call.1} parent=1 // pred_check
      _
    $region15: #{tpu_custom_call.1} parent=1 // pred_check_branch
      %28 = sbr.rel (0) target = $region17
    $region16: #{tpu_custom_call.1} parent=1 // pred_region
      %29 = dma.done [#allocation6], 256
    $region17: #{tpu_custom_call.1} parent=1 // pred_fallthru
      _
    %v30 = vld [vmem:[#allocation5] sm:$0xff]
    %v31 = vld [vmem:[#allocation5 + $0x8] sm:$0xff]
    %p32 = scmp.eq.s32.totalorder 0, 0
    %p33 = scmp.eq.s32.totalorder 0, 0
    %p34 = pnand %p32, %p33
    %p35 = pneg %p34
    // Predicated region
    $region18: #{tpu_custom_call.1} parent=1 // pred_check
      _
    $region19: #{tpu_custom_call.1} parent=1 // pred_check_branch
      %37 = sbr.rel (%p34) target = $region21
    $region20: #{tpu_custom_call.1} parent=1 // pred_region
      %v40 = vcombine.high %v30, %v30
      %v41 = vcombine.high %v31, %v31
      %vm44 = vcmask 1043456
      %v45 = vsel %vm44, %v30, 0.0
      %v46 = vsel %vm44, %v31, 0.0
      %v47 = vadd.f32 %v45, %v46
      %v48 = vsel %vm44, %v40, 0.0
      %v49 = vsel %vm44, %v41, 0.0
      %v50 = vadd.f32 %v48, %v49
      %v51 = vsel %vm44, %v47, 0.0
      %v52 = vsel %vm44, %v50, 0.0
      %v53 = vadd.f32 %v51, %v52
      %54 = vadd.xlane.f32.xlu0 %v53
      %v55 = vpop.xlane.xlu0 %54
      %v56 = vmul.f32 %v55, 0.001953125
      %vm57 = vcmask 3072
      %58 = vst.msk [vmem:[#allocation2] sm:$0xf] %vm57, %v56
      %59 = vst.msk [vmem:[#allocation3] sm:$0xf] %vm57, 0.0
      %60 = vst.msk [vmem:[#allocation4] sm:$0xf] %vm57, 0.0
    $region21: #{tpu_custom_call.1} parent=1 // pred_fallthru
      _
    %v61 = vld [vmem:[#allocation2] sm:$0xf]
    %63 = vset.pattern.permute.xlu0 0
    %64 = vperm.xlu0 %63, %v61
    %v65 = vpop.permute.xlu0 %64
    %v67 = vunpack.c.l.s4 839922192
    %v68 = vunpack.c.0.s8 %v67
    %v69 = vlaneseq
    %v70 = vshrl.u32 %v69, 7
    %v71 = vsub.s32 %v68, %v70
    %v72 = vrot.slane %v65, %v71
    %v74 = vsub.f32 %v30, %v72
    %v75 = vsub.f32 %v31, %v72
    %v78 = vcombine.high %v74, %v74
    %v79 = vcombine.high %v75, %v75
    %vm82 = vcmask 1043456
    %v83 = vsel %vm82, %v74, 0.0
    %v84 = vsel %vm82, %v75, 0.0
    %v85 = vadd.f32 %v83, %v84
    %v86 = vsel %vm82, %v78, 0.0
    %v87 = vsel %vm82, %v79, 0.0
    %v88 = vadd.f32 %v86, %v87
    %v89 = vld [vmem:[#allocation3] sm:$0xf]
    %v90 = vsel %vm82, %v85, 0.0
    %v91 = vsel %vm82, %v88, 0.0
    %v92 = vadd.f32 %v90, %v91
    %93 = vadd.xlane.f32.xlu0 %v92
    %v94 = vpop.xlane.xlu0 %93
    %v95 = vadd.f32 %v89, %v94
    %vm96 = vcmask 3072
    %97 = vst.msk [vmem:[#allocation3] sm:$0xf] %vm96, %v95
    %v98 = vld [vmem:[#allocation4] sm:$0xf]
    %v99 = vmul.f32 %v74, %v74
    %v100 = vmul.f32 %v75, %v75
    %v103 = vcombine.high %v99, %v99
    %v104 = vcombine.high %v100, %v100
    %v107 = vsel %vm82, %v99, 0.0
    %v108 = vsel %vm82, %v100, 0.0
    %v109 = vadd.f32 %v107, %v108
    %v110 = vsel %vm82, %v103, 0.0
    %v111 = vsel %vm82, %v104, 0.0
    %v112 = vadd.f32 %v110, %v111
    %v113 = vsel %vm82, %v109, 0.0
    %v114 = vsel %vm82, %v112, 0.0
    %v115 = vadd.f32 %v113, %v114
    %116 = vadd.xlane.f32.xlu0 %v115
    %v117 = vpop.xlane.xlu0 %116
    %v118 = vadd.f32 %v98, %v117
    %119 = vst.msk [vmem:[#allocation4] sm:$0xf] %vm96, %v118
    // Predicated region
    $region22: #{tpu_custom_call.1} parent=1 // pred_check
      _
    $region23: #{tpu_custom_call.1} parent=1 // pred_check_branch
      %121 = sbr.rel (%p34) target = $region25
    $region24: #{tpu_custom_call.1} parent=1 // pred_region
      %v122 = vld [vmem:[#allocation3] sm:$0xf]
      %v123 = vmul.f32 %v122, 0.001953125
      %v124 = vld [vmem:[#allocation2] sm:$0xf]
      %v125 = vadd.f32 %v124, %v123
      %v126 = vld [vmem:[#allocation4] sm:$0xf]
      %v127 = vmul.f32 %v126, 0.001953125
      %v128 = vmul.f32 %v123, %v123
      %v129 = vsub.f32 %v127, %v128
      %v130 = vmax.f32 %v129, 0.0
      %v131 = vld [vmem:[%s1] sm:$0xf]
      %v132 = vadd.f32 %v130, 1e-05
      %v133 = vrsqrt.pop %v132
      %v134 = vmul.f32 %v131, %v133
      %135 = vst.msk [vmem:[%s3] sm:$0xf] %vm96, %v134
      %v136 = vld [vmem:[%s2] sm:$0xf]
      %v137 = vmul.f32 %v125, %v134
      %v138 = vsub.f32 %v136, %v137
      %139 = vst.msk [vmem:[%s4] sm:$0xf] %vm96, %v138
    $region25: #{tpu_custom_call.1} parent=1 // pred_fallthru
      _
    // Predicated region
    $region26: #{tpu_custom_call.1} parent=1 // pred_check
      _
    $region27: #{tpu_custom_call.1} parent=1 // pred_check_branch
      %141 = sbr.rel (0) target = $region29
    $region28: #{tpu_custom_call.1} parent=1 // pred_region
      _
    $region29: #{tpu_custom_call.1} parent=1 // pred_fallthru
      _
    // Predicated region
    $region30: #{tpu_custom_call.1} parent=1 // pred_check
      _
    $region31: #{tpu_custom_call.1} parent=1 // pred_check_branch
      %143 = sbr.rel (0) target = $region33
    $region32: #{tpu_custom_call.1} parent=1 // pred_region
      _
    $region33: #{tpu_custom_call.1} parent=1 // pred_fallthru
      _
    // Predicated region
    $region34: #{tpu_custom_call.1} parent=1 // pred_check
      _
    $region35: #{tpu_custom_call.1} parent=1 // pred_check_branch
      %145 = sbr.rel (0) target = $region37
    $region36: #{tpu_custom_call.1} parent=1 // pred_region
      _
    $region37: #{tpu_custom_call.1} parent=1 // pred_fallthru
      _
    // Predicated region
    $region38: #{tpu_custom_call.1} parent=1 // pred_check
      _
    $region39: #{tpu_custom_call.1} parent=1 // pred_check_branch
      %147 = sbr.rel (0) target = $region41
    $region40: #{tpu_custom_call.1} parent=1 // pred_region
      _
    $region41: #{tpu_custom_call.1} parent=1 // pred_fallthru
      _
    %148 = vsyncpa [#allocation6], 1

</llo_original>
